<compile_context>
chip_gen: v7x
topology: tpu7x:2x2x1
jax: 0.10.0
libtpu: 0.0.40
codegen_flags: <defaults>
</compile_context>

<pallas_src>
import jax
import jax.numpy as jnp
from jax.experimental import pallas as pl
from jax.experimental.pallas import tpu as pltpu


# ----------------------------- Pallas matmul kernel -----------------------------

def _matmul_relu_kernel(a_ref, b_ref, o_ref):
    # Single K step: bf16 operands on the MXU, f32 accumulation, fused ReLU.
    y = jnp.dot(a_ref[...], b_ref[...], preferred_element_type=jnp.float32)
    o_ref[...] = jnp.maximum(y, 0.0).astype(o_ref.dtype)


def _round_up(x, m):
    return (x + m - 1) // m * m


def _choose_m_tiling(M, K, Nout, out_itemsize, vmem_budget):
    """Pick (Mp, tm): tm a multiple of 16 (bf16-safe sublane tiling) unless it is the
    full padded dim; >=2 tiles when possible (feeds both v7x TensorCores); working
    set (resident B + double-buffered A and out tiles) inside the VMEM budget."""
    b_bytes = K * Nout * 2                                      # resident bf16 B

    def ws(tm):
        return b_bytes + 2 * tm * K * 2 + 2 * tm * Nout * out_itemsize

    if M > 4096:
        for tm in (512, 256, 128):
            if ws(tm) <= vmem_budget:
                return _round_up(M, tm), tm
        return _round_up(M, 128), 128

    # Small/medium M (demo regime): 2 tiles if they fit, else fewer/bigger splits.
    Mp = _round_up(M, 64)
    for d in (2, 4, 8, 16):
        tm = Mp // d
        if tm % 16 == 0 and ws(tm) <= vmem_budget:
            return Mp, tm
    return Mp, Mp                                               # single full-dim tile


def matmul_relu(a, b, *, out_dtype=jnp.bfloat16):
    """out = relu(a @ b).  bf16 operands, f32 MXU accumulation, bf16 output.
    B is fully VMEM-resident; grid only over M tiles."""
    M, K = a.shape
    K2, Nout = b.shape
    assert K == K2

    a = a.astype(jnp.bfloat16)
    b = b.astype(jnp.bfloat16)
    out_itemsize = jnp.dtype(out_dtype).itemsize

    # Generation-aware VMEM budget: ~64 MiB scoped on v5e/v6e (128 MiB physical),
    # ~32 MiB on v7x (64 MiB physical per TensorCore).
    try:
        vmem_cap = int(pltpu.get_tpu_info().vmem_capacity_bytes)
    except Exception:
        vmem_cap = 64 * 1024 * 1024
    vmem_limit = min(vmem_cap // 2, 64 * 1024 * 1024)

    Mp, tm = _choose_m_tiling(M, K, Nout, out_itemsize, int(vmem_limit * 0.9))
    if Mp != M:
        a = jnp.pad(a, ((0, Mp - M), (0, 0)))                   # rows only; K/N unpadded

    out = pl.pallas_call(
        _matmul_relu_kernel,
        out_shape=jax.ShapeDtypeStruct((Mp, Nout), out_dtype),
        grid_spec=pltpu.PrefetchScalarGridSpec(
            num_scalar_prefetch=0,
            grid=(Mp // tm,),
            in_specs=[
                pl.BlockSpec((tm, K), lambda i: (i, 0)),        # A: streamed M tiles
                pl.BlockSpec((K, Nout), lambda i: (0, 0)),      # B: VMEM-resident
            ],
            out_specs=pl.BlockSpec((tm, Nout), lambda i: (i, 0)),
        ),
        compiler_params=pltpu.CompilerParams(
            dimension_semantics=("parallel",),
            vmem_limit_bytes=vmem_limit,
        ),
    )(a, b)

    if Mp != M:
        out = out[:M]
    return out


# ------------------------------ Upsample forward ------------------------------

def upsample_forward(w, x, skip):
    """PyTorch `Upsample.forward(x, skip_input)`.

    x:    (N, Cin, H, W)
    w:    (Cin, Cout, 4, 4)   -- PyTorch ConvTranspose2d weight layout, bias=False
    skip: (N, Cs, 2H, 2W)
    returns (N, Cout + Cs, 2H, 2W) in skip's dtype (NCHW, matching the module).
    """
    N, Cin, H, W = x.shape
    Cin_w, Cout, kh, kw = w.shape
    assert (Cin_w, kh, kw) == (Cin, 4, 4)

    # ---- zero-free sub-pixel lowering of ConvTranspose2d(k4, s2, p1) ----
    # Pad by 1 (NHWC); the 2x2 window at (r, s), r in [0,H], s in [0,W], yields the
    # output pixels {2r-1, 2r} x {2s-1, 2s} via taps  kh = (2+u) - 2a, kw = (2+v) - 2b.
    xp = jnp.pad(x.transpose(0, 2, 3, 1).astype(jnp.bfloat16),
                 ((0, 0), (1, 1), (1, 1), (0, 0)))              # (N, H+2, W+2, Cin)
    taps = [xp[:, a:a + H + 1, b:b + W + 1, :] for a in (0, 1) for b in (0, 1)]
    patches = jnp.concatenate(taps, axis=-1)                    # (N, H+1, W+1, 4*Cin)
    A = patches.reshape(N * (H + 1) * (W + 1), 4 * Cin)
    # TODO(synk): replace this materialized patch matrix with an in-kernel halo gather
    # from xp (memory_space=pl.ANY + manual DMA) for full-size activations.

    # B[(a,b,ci), (u,v,co)] = w[ci, co, 2+u-2a, 2+v-2b]
    kh_idx = jnp.array([[2, 3], [0, 1]])                        # [a, u]
    kw_idx = jnp.array([[2, 3], [0, 1]])                        # [b, v]
    T = w[:, :, kh_idx[:, None, :, None], kw_idx[None, :, None, :]]  # (Cin,Cout,a,b,u,v)
    B = T.transpose(2, 3, 0, 4, 5, 1).reshape(4 * Cin, 4 * Cout)

    # Single MXU matmul with fused ReLU, bf16 output.
    Y = matmul_relu(A, B, out_dtype=jnp.bfloat16)               # (M, 4*Cout)

    # ---- single-rearrange interleave of the 4 sub-pixel phases, then crop the ring ----
    # output pixel (oh, ow) = merged index (2r+u, 2s+v) shifted by +1  ->  crop [1:2H+1].
    Y = Y.reshape(N, H + 1, W + 1, 2, 2, Cout)                  # (n, r, s, u, v, c)
    y = (Y.transpose(0, 1, 3, 2, 4, 5)
           .reshape(N, 2 * (H + 1), 2 * (W + 1), Cout)[:, 1:2 * H + 1, 1:2 * W + 1, :])

    # Module contract: NCHW output, channel concat.  Cast y up to skip's dtype so the
    # skip branch is not silently down-cast.
    y = y.transpose(0, 3, 1, 2).astype(skip.dtype)
    return jnp.concatenate([y, skip], axis=1)


# ----------------------------------- main -----------------------------------

if __name__ == "__main__":
    key = jax.random.PRNGKey(0)
    k_w, k_x, k_s = jax.random.split(key, 3)

    N, Cin, Cout, H, W = 2, 8, 16, 16, 16
    C_skip = Cout
    w = 0.02 * jax.random.normal(k_w, (Cin, Cout, 4, 4), jnp.float32)
    x = jax.random.normal(k_x, (N, Cin, H, W), jnp.float32)
    skip = jax.random.normal(k_s, (N, C_skip, 2 * H, 2 * W), jnp.float32)

    out = jax.jit(upsample_forward)(w, x, skip)
    out = jax.block_until_ready(out)

    assert out.shape == (N, Cout + C_skip, 2 * H, 2 * W), out.shape
    assert bool(jnp.all(jnp.isfinite(out)))

    # Reference: ConvTranspose2d == conv with flipped / IO-swapped kernel + lhs dilation.
    w_eq = jnp.flip(w, axis=(2, 3)).transpose(1, 0, 2, 3)       # (Cout, Cin, 4, 4)
    ref_conv = jax.lax.conv_general_dilated(
        x, w_eq, window_strides=(1, 1), padding=((2, 2), (2, 2)),
        lhs_dilation=(2, 2),
        dimension_numbers=("NCHW", "OIHW", "NCHW"),
        precision=jax.lax.Precision.HIGHEST)
    ref = jnp.concatenate([jnp.maximum(ref_conv, 0.0), skip], axis=1)

    err = float(jnp.max(jnp.abs(out - ref)))
    scale = float(jnp.max(jnp.abs(ref))) + 1e-6
    assert err <= 2e-2 * scale + 1e-3, (err, scale)
    print("KERNEL_OK")
</pallas_src>

<mosaic_0001>
module attributes {stable_mosaic.version = 11 : i64} {
  func.func @_matmul_relu_kernel(%arg0: i32, %arg1: memref<320x32xbf16, #tpu.memory_space<vmem>>, %arg2: memref<32x64xbf16, #tpu.memory_space<vmem>>, %arg3: memref<320x64xbf16, #tpu.memory_space<vmem>>) attributes {dimension_semantics = [#tpu.dimension_semantics<parallel>], iteration_bounds = array<i64: 2>, scalar_prefetch = 0 : i64, scratch_operands = 0 : i64, tpu.core_type = #tpu.core_type<tc>, window_params = [{transform_indices = @transform_0, window_bounds = array<i64: 320, 32>}, {pipeline_mode = #tpu.pipeline_mode<synchronous>, transform_indices = @transform_1, window_bounds = array<i64: 32, 64>}, {transform_indices = @transform_2, window_bounds = array<i64: 320, 64>}]} {
    %c0 = arith.constant 0 : index
    %c0_0 = arith.constant 0 : index
    %0 = vector.load %arg1[%c0, %c0_0] : memref<320x32xbf16, #tpu.memory_space<vmem>>, vector<320x32xbf16>
    %c0_1 = arith.constant 0 : index
    %c0_2 = arith.constant 0 : index
    %1 = vector.load %arg2[%c0_1, %c0_2] : memref<32x64xbf16, #tpu.memory_space<vmem>>, vector<32x64xbf16>
    %cst = arith.constant dense<0.000000e+00> : vector<320x64xf32>
    %2 = tpu.matmul %0, %1, %cst {dimension_numbers = #tpu.dot_dimension_numbers<[1], [0], [0], [1], [0, 0, 1, 1], [], []>} : vector<320x32xbf16>, vector<32x64xbf16>, vector<320x64xf32> -> vector<320x64xf32>
    %cst_3 = arith.constant 0.000000e+00 : f32
    %3 = vector.broadcast %cst_3 : f32 to vector<320x64xf32>
    %4 = arith.maximumf %2, %3 : vector<320x64xf32>
    %5 = arith.truncf %4 : vector<320x64xf32> to vector<320x64xbf16>
    %c0_4 = arith.constant 0 : index
    %c0_5 = arith.constant 0 : index
    %6 = vector.load %arg3[%c0_4, %c0_5] : memref<320x64xbf16, #tpu.memory_space<vmem>>, vector<320x64xbf16>
    tpu.vector_store %arg3[%c0_4, %c0_5], %5 {strides = array<i32>} : memref<320x64xbf16, #tpu.memory_space<vmem>>, vector<320x64xbf16>,
    return
  }
  func.func @transform_0(%arg0: i32) -> (i32, i32) {
    %c0_i32 = arith.constant 0 : i32
    %c0_i32_0 = arith.constant 0 : i32
    return %arg0, %c0_i32 : i32, i32
  }
  func.func @transform_1(%arg0: i32) -> (i32, i32) {
    %c0_i32 = arith.constant 0 : i32
    %c0_i32_0 = arith.constant 0 : i32
    %c0_i32_1 = arith.constant 0 : i32
    return %c0_i32, %c0_i32_0 : i32, i32
  }
  func.func @transform_2(%arg0: i32) -> (i32, i32) {
    %c0_i32 = arith.constant 0 : i32
    %c0_i32_0 = arith.constant 0 : i32
    return %arg0, %c0_i32 : i32, i32
  }
}

</mosaic_0001>

<llo_original>
// kernel: upsample_forward.1
$region0: #{upsample_forward.1}
  #allocation0 [shape = 'u32[]', space=smem, size = 0x4, offset = 0x4, fixed_abs, tag = 'smem constant byte address 0x4 - core index']
  #allocation1 [shape = 'u32[144,128]{1,0:T(1,128)}', space=vmem, size = 0x12000, scoped, tag = 'internal scratch']
  %s0 = inlined_call_operand.vmem [shape: bf16[640,32], index: 0, kind: input, shape index: {}]
  %s1 = inlined_call_operand.vmem [shape: bf16[32,64], index: 1, kind: input, shape index: {}]
  %s2 = inlined_call_operand.vmem [shape: bf16[640,64], index: 2, kind: output, shape index: {}]
  %s3 = sld [smem:[#allocation0]]
  $region41: #{upsample_forward.1} parent=0
    _
  %s5 = ssub.s32 1, %s3
  %s6 = scalar_select 0, %s5, %s3
  loop: start=0, step=1, limit=4
  $region2: #{upsample_forward.1} parent=0 // loop_pre_header
    _
  $region3: #{upsample_forward.1} parent=0 // loop_header
    %s8 = sphi 0, %s12
    %p9 = scmp.ge.s32.totalorder %s8, 4
    %s18 = sphi 0, %s20
    %s21 = sphi 0, %s18
    %s22 = sphi 0, %s21
    %s38 = sphi 0, %s22
    %s42 = sphi 0, %s42
    %s44 = sphi 0, %s42
    %s45 = sphi 0, %s44
    %s59 = sphi 0, %s45
    %s65 = sphi 0, %s67
    %s68 = sphi 0, %s65
    %s69 = sphi 0, %s68
    %s85 = sphi 0, %s69
  $region4: #{upsample_forward.1} parent=0 // loop_header_branch
    %11 = sbr.rel (%p9) target = $region8
  $region5: #{upsample_forward.1} parent=0 // loop_body
    %s13 = ssub.s32 %s8, 1
    %s14 = ssub.s32 %s8, 2
    %s15 = sadd.s32 %s8, 1
    %s16 = ssub.s32 %s8, %s15
    %p17 = scmp.eq.s32.totalorder %s16, 0
    %s19 = sadd.s32 %s18, 1
    %s20 = scalar_select %p17, %s18, %s19
    %p23 = pneg %p17
    %p24 = scmp.eq.s32.totalorder %s8, 1
    %p25 = por %p23, %p24
    %p26 = scmp.ne.s32.totalorder %s18, %s21
    %p27 = scmp.eq.s32.totalorder %s8, 0
    %p28 = por %p26, %p27
    %p29 = scmp.ne.s32.totalorder %s18, %s21
    %p30 = scmp.eq.s32.totalorder %s13, 1
    %p31 = por %p29, %p30
    %p32 = scmp.ne.s32.totalorder %s21, %s22
    %p33 = scmp.eq.s32.totalorder %s13, 0
    %p34 = por %p32, %p33
    %p35 = scmp.ne.s32.totalorder %s21, %s22
    %p36 = scmp.eq.s32.totalorder %s14, 1
    %p37 = por %p35, %p36
    %p39 = scmp.ne.s32.totalorder %s22, %s38
    %p40 = scmp.eq.s32.totalorder %s14, 0
    %p41 = por %p39, %p40
    %s43 = sadd.s32 %s42, 1
    %p46 = scmp.eq.s32.totalorder %s8, 1
    %p47 = scmp.ne.s32.totalorder %s42, %s44
    %p48 = scmp.eq.s32.totalorder %s8, 0
    %p49 = por %p47, %p48
    %p50 = scmp.ne.s32.totalorder %s42, %s44
    %p51 = scmp.eq.s32.totalorder %s13, 1
    %p52 = por %p50, %p51
    %p53 = scmp.ne.s32.totalorder %s44, %s45
    %p54 = scmp.eq.s32.totalorder %s13, 0
    %p55 = por %p53, %p54
    %p56 = scmp.ne.s32.totalorder %s44, %s45
    %p57 = scmp.eq.s32.totalorder %s14, 1
    %p58 = por %p56, %p57
    %p60 = scmp.ne.s32.totalorder %s45, %s59
    %p61 = scmp.eq.s32.totalorder %s14, 0
    %p62 = por %p60, %p61
    %s63 = ssub.s32 %s8, %s15
    %p64 = scmp.eq.s32.totalorder %s63, 0
    %s66 = sadd.s32 %s65, 1
    %s67 = scalar_select %p64, %s65, %s66
    %p70 = pneg %p64
    %p71 = scmp.eq.s32.totalorder %s8, 1
    %p72 = por %p70, %p71
    %p73 = scmp.ne.s32.totalorder %s65, %s68
    %p74 = scmp.eq.s32.totalorder %s8, 0
    %p75 = por %p73, %p74
    %p76 = scmp.ne.s32.totalorder %s65, %s68
    %p77 = scmp.eq.s32.totalorder %s13, 1
    %p78 = por %p76, %p77
    %p79 = scmp.ne.s32.totalorder %s68, %s69
    %p80 = scmp.eq.s32.totalorder %s13, 0
    %p81 = por %p79, %p80
    %p82 = scmp.ne.s32.totalorder %s68, %s69
    %p83 = scmp.eq.s32.totalorder %s14, 1
    %p84 = por %p82, %p83
    %p86 = scmp.ne.s32.totalorder %s69, %s85
    %p87 = scmp.eq.s32.totalorder %s14, 0
    %p88 = por %p86, %p87
    %p89 = scmp.le.s32.totalorder 1, %s8
    %p90 = scmp.lt.s32.totalorder %s8, 3
    %p91 = pnand %p89, %p90
    %p92 = pneg %p91
    // Predicated region
    $region9: #{upsample_forward.1} parent=5 // pred_check
      _
    $region10: #{upsample_forward.1} parent=5 // pred_check_branch
      %94 = sbr.rel (%p91) target = $region12
    $region11: #{upsample_forward.1} parent=5 // pred_region
      %s95 = ssub.s32 %s8, 1
      // Predicated region
      $region13: #{upsample_forward.1} parent=11 // pred_check
        %p96 = pneg %p55
      $region14: #{upsample_forward.1} parent=11 // pred_check_branch
        %98 = sbr.rel (%p96) target = $region16
      $region15: #{upsample_forward.1} parent=11 // pred_region
        _
      $region16: #{upsample_forward.1} parent=11 // pred_fallthru
        _
    $region12: #{upsample_forward.1} parent=5 // pred_fallthru
      _
    %p99 = scmp.lt.s32.totalorder %s8, 2
    // Predicated region
    $region17: #{upsample_forward.1} parent=5 // pred_check
      %p100 = pneg %p99
    $region18: #{upsample_forward.1} parent=5 // pred_check_branch
      %102 = sbr.rel (%p100) target = $region20
    $region19: #{upsample_forward.1} parent=5 // pred_region
      // Predicated region
      $region21: #{upsample_forward.1} parent=19 // pred_check
        %p103 = pneg %p28
      $region22: #{upsample_forward.1} parent=19 // pred_check_branch
        %105 = sbr.rel (%p103) target = $region24
      $region23: #{upsample_forward.1} parent=19 // pred_region
        %s106 = smul.u32 40, %s8
        %p107 = scmp.lt.s32.totalorder %s106, 79
        %s108 = scalar_select %p107, %s106, 79
        %s109 = smul.addr %s108, 4
        %s110 = scalar_lea.vmem %s0, %s109
        %s111 = smul.u32 40, %s8
      $region24: #{upsample_forward.1} parent=19 // pred_fallthru
        _
    $region20: #{upsample_forward.1} parent=5 // pred_fallthru
      _
    %p112 = scmp.le.s32.totalorder 1, %s8
    %p113 = scmp.lt.s32.totalorder %s8, 3
    %p114 = pnand %p112, %p113
    %p115 = pneg %p114
    // Predicated region
    $region25: #{upsample_forward.1} parent=5 // pred_check
      _
    $region26: #{upsample_forward.1} parent=5 // pred_check_branch
      %117 = sbr.rel (%p114) target = $region28
    $region27: #{upsample_forward.1} parent=5 // pred_region
      %s118 = ssub.s32 %s8, 1
      %s119 = smul.u32 40, %s13
      %p120 = scmp.lt.s32.totalorder %s119, 79
      %s121 = scalar_select %p120, %s119, 79
      %s122 = smul.addr %s121, 4
      %s123 = scalar_lea.vmem %s0, %s122
      %p124 = pneg %p34
      %p125 = pneg %p31
      %p126 = pneg %p55
      %p127 = pneg %p52
      %p128 = pneg %p81
      %p129 = pneg %p78
      %s130 = smul.u32 40, %s13
      %p131 = scmp.lt.s32.totalorder %s130, 79
      %s132 = scalar_select %p131, %s130, 79
      %s133 = smul.addr %s132, 4
      %s134 = scalar_lea.vmem %s2, %s133
      %s135 = smul.u32 40, %s13
      %p136 = scmp.lt.s32.totalorder %s135, 79
      %s137 = scalar_select %p136, %s135, 79
      %s138 = smul.addr %s137, 4
      %s139 = scalar_lea.vmem %s0, %s138
      %s140 = smul.u32 40, %s13
      %s141 = smul.u32 40, %s13
      %p142 = scmp.lt.s32.totalorder %s141, 79
      %s143 = scalar_select %p142, %s141, 79
      %s144 = smul.addr %s143, 4
      %s145 = scalar_lea.vmem %s2, %s144
      %s146 = smul.u32 40, %s13
      %v148 = vld [vmem:[%s139] sm:$0xf]
      %v149 = vld [vmem:[%s139 + $0x4] sm:$0xf]
      %v150 = vld [vmem:[%s139 + $0x8] sm:$0xf]
      %v151 = vld [vmem:[%s139 + $0xc] sm:$0xf]
      %v152 = vld [vmem:[%s139 + $0x10] sm:$0xf]
      %v153 = vld [vmem:[%s139 + $0x14] sm:$0xf]
      %v154 = vld [vmem:[%s139 + $0x18] sm:$0xf]
      %v155 = vld [vmem:[%s139 + $0x1c] sm:$0xf]
      %v156 = vld [vmem:[%s139 + $0x20] sm:$0xf]
      %v157 = vld [vmem:[%s139 + $0x24] sm:$0xf]
      %v158 = vld [vmem:[%s139 + $0x28] sm:$0xf]
      %v159 = vld [vmem:[%s139 + $0x2c] sm:$0xf]
      %v160 = vld [vmem:[%s139 + $0x30] sm:$0xf]
      %v161 = vld [vmem:[%s139 + $0x34] sm:$0xf]
      %v162 = vld [vmem:[%s139 + $0x38] sm:$0xf]
      %v163 = vld [vmem:[%s139 + $0x3c] sm:$0xf]
      %v164 = vld [vmem:[%s139 + $0x40] sm:$0xf]
      %v165 = vld [vmem:[%s139 + $0x44] sm:$0xf]
      %v166 = vld [vmem:[%s139 + $0x48] sm:$0xf]
      %v167 = vld [vmem:[%s139 + $0x4c] sm:$0xf]
      %v168 = vld [vmem:[%s139 + $0x50] sm:$0xf]
      %v169 = vld [vmem:[%s139 + $0x54] sm:$0xf]
      %v170 = vld [vmem:[%s139 + $0x58] sm:$0xf]
      %v171 = vld [vmem:[%s139 + $0x5c] sm:$0xf]
      %v172 = vld [vmem:[%s139 + $0x60] sm:$0xf]
      %v173 = vld [vmem:[%s139 + $0x64] sm:$0xf]
      %v174 = vld [vmem:[%s139 + $0x68] sm:$0xf]
      %v175 = vld [vmem:[%s139 + $0x6c] sm:$0xf]
      %v176 = vld [vmem:[%s139 + $0x70] sm:$0xf]
      %v177 = vld [vmem:[%s139 + $0x74] sm:$0xf]
      %v178 = vld [vmem:[%s139 + $0x78] sm:$0xf]
      %v179 = vld [vmem:[%s139 + $0x7c] sm:$0xf]
      %v180 = vld [vmem:[%s139 + $0x80] sm:$0xf]
      %v181 = vld [vmem:[%s139 + $0x84] sm:$0xf]
      %v182 = vld [vmem:[%s139 + $0x88] sm:$0xf]
      %v183 = vld [vmem:[%s139 + $0x8c] sm:$0xf]
      %v184 = vld [vmem:[%s139 + $0x90] sm:$0xf]
      %v185 = vld [vmem:[%s139 + $0x94] sm:$0xf]
      %v186 = vld [vmem:[%s139 + $0x98] sm:$0xf]
      %v187 = vld [vmem:[%s139 + $0x9c] sm:$0xf]
      %v188 = vld [vmem:[%s1] sm:$0xf]
      %v189 = vld [vmem:[%s1 + $0x4] sm:$0xf]
      %v190 = vld [vmem:[%s1 + $0x8] sm:$0xf]
      %v191 = vld [vmem:[%s1 + $0xc] sm:$0xf]
      %v232 = vunpack.c.l.b16 %v148
      %v233 = vunpack.c.l.b16 %v149
      %v234 = vunpack.c.l.b16 %v150
      %v235 = vunpack.c.l.b16 %v151
      %v236 = vunpack.c.l.b16 %v152
      %v237 = vunpack.c.l.b16 %v153
      %v238 = vunpack.c.l.b16 %v154
      %v239 = vunpack.c.l.b16 %v155
      %v240 = vunpack.c.l.b16 %v156
      %v241 = vunpack.c.l.b16 %v157
      %v242 = vunpack.c.l.b16 %v158
      %v243 = vunpack.c.l.b16 %v159
      %v244 = vunpack.c.l.b16 %v160
      %v245 = vunpack.c.l.b16 %v161
      %v246 = vunpack.c.l.b16 %v162
      %v247 = vunpack.c.l.b16 %v163
      %v248 = vunpack.c.l.b16 %v164
      %v249 = vunpack.c.l.b16 %v165
      %v250 = vunpack.c.l.b16 %v166
      %v251 = vunpack.c.l.b16 %v167
      %v252 = vunpack.c.l.b16 %v168
      %v253 = vunpack.c.l.b16 %v169
      %v254 = vunpack.c.l.b16 %v170
      %v255 = vunpack.c.l.b16 %v171
      %v256 = vunpack.c.l.b16 %v172
      %v257 = vunpack.c.l.b16 %v173
      %v258 = vunpack.c.l.b16 %v174
      %v259 = vunpack.c.l.b16 %v175
      %v260 = vunpack.c.l.b16 %v176
      %v261 = vunpack.c.l.b16 %v177
      %v262 = vunpack.c.l.b16 %v178
      %v263 = vunpack.c.l.b16 %v179
      %v264 = vunpack.c.l.b16 %v180
      %v265 = vunpack.c.l.b16 %v181
      %v266 = vunpack.c.l.b16 %v182
      %v267 = vunpack.c.l.b16 %v183
      %v268 = vunpack.c.l.b16 %v184
      %v269 = vunpack.c.l.b16 %v185
      %v270 = vunpack.c.l.b16 %v186
      %v271 = vunpack.c.l.b16 %v187
      %v272 = vpack.c.b16 %v233, %v232
      %v273 = vpack.c.b16 %v235, %v234
      %v274 = vpack.c.b16 %v237, %v236
      %v275 = vpack.c.b16 %v239, %v238
      %v276 = vpack.c.b16 %v241, %v240
      %v277 = vpack.c.b16 %v243, %v242
      %v278 = vpack.c.b16 %v245, %v244
      %v279 = vpack.c.b16 %v247, %v246
      %v280 = vpack.c.b16 %v249, %v248
      %v281 = vpack.c.b16 %v251, %v250
      %v282 = vpack.c.b16 %v253, %v252
      %v283 = vpack.c.b16 %v255, %v254
      %v284 = vpack.c.b16 %v257, %v256
      %v285 = vpack.c.b16 %v259, %v258
      %v286 = vpack.c.b16 %v261, %v260
      %v287 = vpack.c.b16 %v263, %v262
      %v288 = vpack.c.b16 %v265, %v264
      %v289 = vpack.c.b16 %v267, %v266
      %v290 = vpack.c.b16 %v269, %v268
      %v291 = vpack.c.b16 %v271, %v270
      %v296 = vunpack.c.l.b16 %v188
      %v297 = vunpack.c.l.b16 %v189
      %v298 = vunpack.c.l.b16 %v190
      %v299 = vunpack.c.l.b16 %v191
      %v300 = vpack.c.b16 %v297, %v296
      %v301 = vpack.c.b16 %v299, %v298
      %vm304 = vcmask 261120
      %v306 = vsel %vm304, %v272, 0
      %v309 = vsel %vm304, %v273, 0
      %v312 = vsel %vm304, %v274, 0
      %v315 = vsel %vm304, %v275, 0
      %v318 = vsel %vm304, %v276, 0
      %v321 = vsel %vm304, %v277, 0
      %v324 = vsel %vm304, %v278, 0
      %v327 = vsel %vm304, %v279, 0
      %v330 = vsel %vm304, %v280, 0
      %v333 = vsel %vm304, %v281, 0
      %v336 = vsel %vm304, %v282, 0
      %v339 = vsel %vm304, %v283, 0
      %v342 = vsel %vm304, %v284, 0
      %v345 = vsel %vm304, %v285, 0
      %v348 = vsel %vm304, %v286, 0
      %v351 = vsel %vm304, %v287, 0
      %v354 = vsel %vm304, %v288, 0
      %v357 = vsel %vm304, %v289, 0
      %v360 = vsel %vm304, %v290, 0
      %v363 = vsel %vm304, %v291, 0
      %365 = vmatprep.subr.bf16.mxu0 0
      %366 = vmatpush1.bf16.msra.mxu0 %v300
      %367 = vmatprep.subr.bf16.mxu0 0
      %368 = vmatpush1.bf16.msra.mxu0 %v301
      %369 = vmatprep.subr.bf16.mxu0 0
      %370 = vmatpush1.bf16.msra.mxu0 0
      %371 = vmatprep.subr.bf16.mxu0 0
      %372 = vmatpush1.bf16.msra.mxu0 0
      %373 = vmatprep.subr.bf16.mxu0 0
      %374 = vmatpush1.bf16.msra.mxu0 0
      %375 = vmatprep.subr.bf16.mxu0 0
      %376 = vmatpush1.bf16.msra.mxu0 0
      %377 = vmatprep.subr.bf16.mxu0 0
      %378 = vmatpush1.bf16.msra.mxu0 0
      %379 = vmatprep.subr.bf16.mxu0 0
      %380 = vmatpush1.bf16.msra.mxu0 0
      %381 = vmatprep.subr.bf16.mxu0 0
      %382 = vmatpush1.bf16.msra.mxu0 0
      %383 = vmatprep.subr.bf16.mxu0 0
      %384 = vmatpush1.bf16.msra.mxu0 0
      %385 = vmatprep.subr.bf16.mxu0 0
      %386 = vmatpush1.bf16.msra.mxu0 0
      %387 = vmatprep.subr.bf16.mxu0 0
      %388 = vmatpush1.bf16.msra.mxu0 0
      %389 = vmatprep.subr.bf16.mxu0 0
      %390 = vmatpush1.bf16.msra.mxu0 0
      %391 = vmatprep.subr.bf16.mxu0 0
      %392 = vmatpush1.bf16.msra.mxu0 0
      %393 = vmatprep.subr.bf16.mxu0 0
      %394 = vmatpush1.bf16.msra.mxu0 0
      %395 = vmatprep.subr.bf16.mxu0 0
      %396 = vmatpush1.bf16.msra.mxu0 0
      %397 = vmatprep.mubr.bf16.mxu0 0
      %398 = vmatmul.mubr.bf16.gmra.mrb[0].mxu0 %v306
      %v399 = vpop.f32.mrb[0].mxu0
      %v400 = vadd.f32 0.0, %v399
      %v401 = vpop.f32.mrb[0].mxu0
      %v402 = vpop.f32.mrb[0].mxu0
      %v403 = vadd.f32 0.0, %v402
      %v404 = vpop.f32.mrb[0].mxu0
      %405 = vmatprep.mubr.bf16.mxu0 0
      %406 = vmatmul.mubr.bf16.gmra.mrb[0].mxu0 %v309
      %v407 = vpop.f32.mrb[0].mxu0
      %v408 = vadd.f32 0.0, %v407
      %v409 = vpop.f32.mrb[0].mxu0
      %v410 = vpop.f32.mrb[0].mxu0
      %v411 = vadd.f32 0.0, %v410
      %v412 = vpop.f32.mrb[0].mxu0
      %413 = vmatprep.mubr.bf16.mxu0 0
      %414 = vmatmul.mubr.bf16.gmra.mrb[0].mxu0 %v312
      %v415 = vpop.f32.mrb[0].mxu0
      %v416 = vadd.f32 0.0, %v415
      %v417 = vpop.f32.mrb[0].mxu0
      %v418 = vpop.f32.mrb[0].mxu0
      %v419 = vadd.f32 0.0, %v418
      %v420 = vpop.f32.mrb[0].mxu0
      %421 = vmatprep.mubr.bf16.mxu0 0
      %422 = vmatmul.mubr.bf16.gmra.mrb[0].mxu0 %v315
      %v423 = vpop.f32.mrb[0].mxu0
      %v424 = vadd.f32 0.0, %v423
      %v425 = vpop.f32.mrb[0].mxu0
      %v426 = vpop.f32.mrb[0].mxu0
      %v427 = vadd.f32 0.0, %v426
      %v428 = vpop.f32.mrb[0].mxu0
      %429 = vmatprep.mubr.bf16.mxu0 0
      %430 = vmatmul.mubr.bf16.gmra.mrb[0].mxu0 %v318
      %v431 = vpop.f32.mrb[0].mxu0
      %v432 = vadd.f32 0.0, %v431
      %v433 = vpop.f32.mrb[0].mxu0
      %v434 = vpop.f32.mrb[0].mxu0
      %v435 = vadd.f32 0.0, %v434
      %v436 = vpop.f32.mrb[0].mxu0
      %437 = vmatprep.mubr.bf16.mxu0 0
      %438 = vmatmul.mubr.bf16.gmra.mrb[0].mxu0 %v321
      %v439 = vpop.f32.mrb[0].mxu0
      %v440 = vadd.f32 0.0, %v439
      %v441 = vpop.f32.mrb[0].mxu0
      %v442 = vpop.f32.mrb[0].mxu0
      %v443 = vadd.f32 0.0, %v442
      %v444 = vpop.f32.mrb[0].mxu0
      %445 = vmatprep.mubr.bf16.mxu0 0
      %446 = vmatmul.mubr.bf16.gmra.mrb[0].mxu0 %v324
      %v447 = vpop.f32.mrb[0].mxu0
      %v448 = vadd.f32 0.0, %v447
      %v449 = vpop.f32.mrb[0].mxu0
      %v450 = vpop.f32.mrb[0].mxu0
      %v451 = vadd.f32 0.0, %v450
      %v452 = vpop.f32.mrb[0].mxu0
      %453 = vmatprep.mubr.bf16.mxu0 0
      %454 = vmatmul.mubr.bf16.gmra.mrb[0].mxu0 %v327
      %v455 = vpop.f32.mrb[0].mxu0
      %v456 = vadd.f32 0.0, %v455
      %v457 = vpop.f32.mrb[0].mxu0
      %v458 = vpop.f32.mrb[0].mxu0
      %v459 = vadd.f32 0.0, %v458
      %v460 = vpop.f32.mrb[0].mxu0
      %461 = vmatprep.mubr.bf16.mxu0 0
      %462 = vmatmul.mubr.bf16.gmra.mrb[0].mxu0 %v330
      %v463 = vpop.f32.mrb[0].mxu0
      %v464 = vadd.f32 0.0, %v463
      %v465 = vpop.f32.mrb[0].mxu0
      %v466 = vpop.f32.mrb[0].mxu0
      %v467 = vadd.f32 0.0, %v466
      %v468 = vpop.f32.mrb[0].mxu0
      %469 = vmatprep.mubr.bf16.mxu0 0
      %470 = vmatmul.mubr.bf16.gmra.mrb[0].mxu0 %v333
      %v471 = vpop.f32.mrb[0].mxu0
      %v472 = vadd.f32 0.0, %v471
      %v473 = vpop.f32.mrb[0].mxu0
      %v474 = vpop.f32.mrb[0].mxu0
      %v475 = vadd.f32 0.0, %v474
      %v476 = vpop.f32.mrb[0].mxu0
      %477 = vmatprep.mubr.bf16.mxu0 0
      %478 = vmatmul.mubr.bf16.gmra.mrb[0].mxu0 %v336
      %v479 = vpop.f32.mrb[0].mxu0
      %v480 = vadd.f32 0.0, %v479
      %v481 = vpop.f32.mrb[0].mxu0
      %v482 = vpop.f32.mrb[0].mxu0
      %v483 = vadd.f32 0.0, %v482
      %v484 = vpop.f32.mrb[0].mxu0
      %485 = vmatprep.mubr.bf16.mxu0 0
      %486 = vmatmul.mubr.bf16.gmra.mrb[0].mxu0 %v339
      %v487 = vpop.f32.mrb[0].mxu0
      %v488 = vadd.f32 0.0, %v487
      %v489 = vpop.f32.mrb[0].mxu0
      %v490 = vpop.f32.mrb[0].mxu0
      %v491 = vadd.f32 0.0, %v490
      %v492 = vpop.f32.mrb[0].mxu0
      %493 = vmatprep.mubr.bf16.mxu0 0
      %494 = vmatmul.mubr.bf16.gmra.mrb[0].mxu0 %v342
      %v495 = vpop.f32.mrb[0].mxu0
      %v496 = vadd.f32 0.0, %v495
      %v497 = vpop.f32.mrb[0].mxu0
      %v498 = vpop.f32.mrb[0].mxu0
      %v499 = vadd.f32 0.0, %v498
      %v500 = vpop.f32.mrb[0].mxu0
      %501 = vmatprep.mubr.bf16.mxu0 0
      %502 = vmatmul.mubr.bf16.gmra.mrb[0].mxu0 %v345
      %v503 = vpop.f32.mrb[0].mxu0
      %v504 = vadd.f32 0.0, %v503
      %v505 = vpop.f32.mrb[0].mxu0
      %v506 = vpop.f32.mrb[0].mxu0
      %v507 = vadd.f32 0.0, %v506
      %v508 = vpop.f32.mrb[0].mxu0
      %509 = vmatprep.mubr.bf16.mxu0 0
      %510 = vmatmul.mubr.bf16.gmra.mrb[0].mxu0 %v348
      %v511 = vpop.f32.mrb[0].mxu0
      %v512 = vadd.f32 0.0, %v511
      %v513 = vpop.f32.mrb[0].mxu0
      %v514 = vpop.f32.mrb[0].mxu0
      %v515 = vadd.f32 0.0, %v514
      %v516 = vpop.f32.mrb[0].mxu0
      %517 = vmatprep.mubr.bf16.mxu0 0
      %518 = vmatmul.mubr.bf16.gmra.mrb[0].mxu0 %v351
      %v519 = vpop.f32.mrb[0].mxu0
      %v520 = vadd.f32 0.0, %v519
      %v521 = vpop.f32.mrb[0].mxu0
      %v522 = vpop.f32.mrb[0].mxu0
      %v523 = vadd.f32 0.0, %v522
      %v524 = vpop.f32.mrb[0].mxu0
      %525 = vmatprep.mubr.bf16.mxu0 0
      %526 = vmatmul.mubr.bf16.gmra.mrb[0].mxu0 %v354
      %v527 = vpop.f32.mrb[0].mxu0
      %v528 = vadd.f32 0.0, %v527
      %v529 = vpop.f32.mrb[0].mxu0
      %v530 = vpop.f32.mrb[0].mxu0
      %v531 = vadd.f32 0.0, %v530
      %v532 = vpop.f32.mrb[0].mxu0
      %533 = vmatprep.mubr.bf16.mxu0 0
      %534 = vmatmul.mubr.bf16.gmra.mrb[0].mxu0 %v357
      %v535 = vpop.f32.mrb[0].mxu0
      %v536 = vadd.f32 0.0, %v535
      %v537 = vpop.f32.mrb[0].mxu0
      %v538 = vpop.f32.mrb[0].mxu0
      %v539 = vadd.f32 0.0, %v538
      %v540 = vpop.f32.mrb[0].mxu0
      %541 = vmatprep.mubr.bf16.mxu0 0
      %542 = vmatmul.mubr.bf16.gmra.mrb[0].mxu0 %v360
      %v543 = vpop.f32.mrb[0].mxu0
      %v544 = vadd.f32 0.0, %v543
      %v545 = vpop.f32.mrb[0].mxu0
      %v546 = vpop.f32.mrb[0].mxu0
      %v547 = vadd.f32 0.0, %v546
      %v548 = vpop.f32.mrb[0].mxu0
      %549 = vmatprep.mubr.bf16.mxu0 0
      %550 = vmatmul.mubr.bf16.gmra.mrb[0].mxu0 %v363
      %v551 = vpop.f32.mrb[0].mxu0
      %v552 = vadd.f32 0.0, %v551
      %v553 = vpop.f32.mrb[0].mxu0
      %v554 = vpop.f32.mrb[0].mxu0
      %v555 = vadd.f32 0.0, %v554
      %v556 = vpop.f32.mrb[0].mxu0
      %557 = vdwg.mxu0
      %v558 = vmax.f32 %v400, 0.0
      %v559 = vmax.f32 %v403, 0.0
      %v560 = vmax.f32 %v408, 0.0
      %v561 = vmax.f32 %v411, 0.0
      %v562 = vmax.f32 %v416, 0.0
      %v563 = vmax.f32 %v419, 0.0
      %v564 = vmax.f32 %v424, 0.0
      %v565 = vmax.f32 %v427, 0.0
      %v566 = vmax.f32 %v432, 0.0
      %v567 = vmax.f32 %v435, 0.0
      %v568 = vmax.f32 %v440, 0.0
      %v569 = vmax.f32 %v443, 0.0
      %v570 = vmax.f32 %v448, 0.0
      %v571 = vmax.f32 %v451, 0.0
      %v572 = vmax.f32 %v456, 0.0
      %v573 = vmax.f32 %v459, 0.0
      %v574 = vmax.f32 %v464, 0.0
      %v575 = vmax.f32 %v467, 0.0
      %v576 = vmax.f32 %v472, 0.0
      %v577 = vmax.f32 %v475, 0.0
      %v578 = vmax.f32 %v480, 0.0
      %v579 = vmax.f32 %v483, 0.0
      %v580 = vmax.f32 %v488, 0.0
      %v581 = vmax.f32 %v491, 0.0
      %v582 = vmax.f32 %v496, 0.0
      %v583 = vmax.f32 %v499, 0.0
      %v584 = vmax.f32 %v504, 0.0
      %v585 = vmax.f32 %v507, 0.0
      %v586 = vmax.f32 %v512, 0.0
      %v587 = vmax.f32 %v515, 0.0
      %v588 = vmax.f32 %v520, 0.0
      %v589 = vmax.f32 %v523, 0.0
      %v590 = vmax.f32 %v528, 0.0
      %v591 = vmax.f32 %v531, 0.0
      %v592 = vmax.f32 %v536, 0.0
      %v593 = vmax.f32 %v539, 0.0
      %v594 = vmax.f32 %v544, 0.0
      %v595 = vmax.f32 %v547, 0.0
      %v596 = vmax.f32 %v552, 0.0
      %v597 = vmax.f32 %v555, 0.0
      %v598 = vpack.c.bf16 %v559, %v558
      %v599 = vpack.c.bf16 %v561, %v560
      %v600 = vpack.c.bf16 %v563, %v562
      %v601 = vpack.c.bf16 %v565, %v564
      %v602 = vpack.c.bf16 %v567, %v566
      %v603 = vpack.c.bf16 %v569, %v568
      %v604 = vpack.c.bf16 %v571, %v570
      %v605 = vpack.c.bf16 %v573, %v572
      %v606 = vpack.c.bf16 %v575, %v574
      %v607 = vpack.c.bf16 %v577, %v576
      %v608 = vpack.c.bf16 %v579, %v578
      %v609 = vpack.c.bf16 %v581, %v580
      %v610 = vpack.c.bf16 %v583, %v582
      %v611 = vpack.c.bf16 %v585, %v584
      %v612 = vpack.c.bf16 %v587, %v586
      %v613 = vpack.c.bf16 %v589, %v588
      %v614 = vpack.c.bf16 %v591, %v590
      %v615 = vpack.c.bf16 %v593, %v592
      %v616 = vpack.c.bf16 %v595, %v594
      %v617 = vpack.c.bf16 %v597, %v596
      %v638 = vunpack.c.l.b16 %v598
      %v639 = vunpack.c.h.b16 %v598
      %v640 = vunpack.c.l.b16 %v599
      %v641 = vunpack.c.h.b16 %v599
      %v642 = vunpack.c.l.b16 %v600
      %v643 = vunpack.c.h.b16 %v600
      %v644 = vunpack.c.l.b16 %v601
      %v645 = vunpack.c.h.b16 %v601
      %v646 = vunpack.c.l.b16 %v602
      %v647 = vunpack.c.h.b16 %v602
      %v648 = vunpack.c.l.b16 %v603
      %v649 = vunpack.c.h.b16 %v603
      %v650 = vunpack.c.l.b16 %v604
      %v651 = vunpack.c.h.b16 %v604
      %v652 = vunpack.c.l.b16 %v605
      %v653 = vunpack.c.h.b16 %v605
      %v654 = vunpack.c.l.b16 %v606
      %v655 = vunpack.c.h.b16 %v606
      %v656 = vunpack.c.l.b16 %v607
      %v657 = vunpack.c.h.b16 %v607
      %v658 = vunpack.c.l.b16 %v608
      %v659 = vunpack.c.h.b16 %v608
      %v660 = vunpack.c.l.b16 %v609
      %v661 = vunpack.c.h.b16 %v609
      %v662 = vunpack.c.l.b16 %v610
      %v663 = vunpack.c.h.b16 %v610
      %v664 = vunpack.c.l.b16 %v611
      %v665 = vunpack.c.h.b16 %v611
      %v666 = vunpack.c.l.b16 %v612
      %v667 = vunpack.c.h.b16 %v612
      %v668 = vunpack.c.l.b16 %v613
      %v669 = vunpack.c.h.b16 %v613
      %v670 = vunpack.c.l.b16 %v614
      %v671 = vunpack.c.h.b16 %v614
      %v672 = vunpack.c.l.b16 %v615
      %v673 = vunpack.c.h.b16 %v615
      %v674 = vunpack.c.l.b16 %v616
      %v675 = vunpack.c.h.b16 %v616
      %v676 = vunpack.c.l.b16 %v617
      %v677 = vunpack.c.h.b16 %v617
      %v678 = vpack.c.b16 %v638, %v638
      %v679 = vpack.c.b16 %v639, %v639
      %v680 = vpack.c.b16 %v640, %v640
      %v681 = vpack.c.b16 %v641, %v641
      %v682 = vpack.c.b16 %v642, %v642
      %v683 = vpack.c.b16 %v643, %v643
      %v684 = vpack.c.b16 %v644, %v644
      %v685 = vpack.c.b16 %v645, %v645
      %v686 = vpack.c.b16 %v646, %v646
      %v687 = vpack.c.b16 %v647, %v647
      %v688 = vpack.c.b16 %v648, %v648
      %v689 = vpack.c.b16 %v649, %v649
      %v690 = vpack.c.b16 %v650, %v650
      %v691 = vpack.c.b16 %v651, %v651
      %v692 = vpack.c.b16 %v652, %v652
      %v693 = vpack.c.b16 %v653, %v653
      %v694 = vpack.c.b16 %v654, %v654
      %v695 = vpack.c.b16 %v655, %v655
      %v696 = vpack.c.b16 %v656, %v656
      %v697 = vpack.c.b16 %v657, %v657
      %v698 = vpack.c.b16 %v658, %v658
      %v699 = vpack.c.b16 %v659, %v659
      %v700 = vpack.c.b16 %v660, %v660
      %v701 = vpack.c.b16 %v661, %v661
      %v702 = vpack.c.b16 %v662, %v662
      %v703 = vpack.c.b16 %v663, %v663
      %v704 = vpack.c.b16 %v664, %v664
      %v705 = vpack.c.b16 %v665, %v665
      %v706 = vpack.c.b16 %v666, %v666
      %v707 = vpack.c.b16 %v667, %v667
      %v708 = vpack.c.b16 %v668, %v668
      %v709 = vpack.c.b16 %v669, %v669
      %v710 = vpack.c.b16 %v670, %v670
      %v711 = vpack.c.b16 %v671, %v671
      %v712 = vpack.c.b16 %v672, %v672
      %v713 = vpack.c.b16 %v673, %v673
      %v714 = vpack.c.b16 %v674, %v674
      %v715 = vpack.c.b16 %v675, %v675
      %v716 = vpack.c.b16 %v676, %v676
      %v717 = vpack.c.b16 %v677, %v677
      %vm758 = vcmask 519168
      %759 = vst.msk [vmem:[%s145] sm:$0xf] %vm758, %v678
      %760 = vst.msk [vmem:[%s145 + $0x4] sm:$0xf] %vm758, %v679
      %761 = vst.msk [vmem:[%s145 + $0x8] sm:$0xf] %vm758, %v680
      %762 = vst.msk [vmem:[%s145 + $0xc] sm:$0xf] %vm758, %v681
      %763 = vst.msk [vmem:[%s145 + $0x10] sm:$0xf] %vm758, %v682
      %764 = vst.msk [vmem:[%s145 + $0x14] sm:$0xf] %vm758, %v683
      %765 = vst.msk [vmem:[%s145 + $0x18] sm:$0xf] %vm758, %v684
      %766 = vst.msk [vmem:[%s145 + $0x1c] sm:$0xf] %vm758, %v685
      %767 = vst.msk [vmem:[%s145 + $0x20] sm:$0xf] %vm758, %v686
      %768 = vst.msk [vmem:[%s145 + $0x24] sm:$0xf] %vm758, %v687
      %769 = vst.msk [vmem:[%s145 + $0x28] sm:$0xf] %vm758, %v688
      %770 = vst.msk [vmem:[%s145 + $0x2c] sm:$0xf] %vm758, %v689
      %771 = vst.msk [vmem:[%s145 + $0x30] sm:$0xf] %vm758, %v690
      %772 = vst.msk [vmem:[%s145 + $0x34] sm:$0xf] %vm758, %v691
      %773 = vst.msk [vmem:[%s145 + $0x38] sm:$0xf] %vm758, %v692
      %774 = vst.msk [vmem:[%s145 + $0x3c] sm:$0xf] %vm758, %v693
      %775 = vst.msk [vmem:[%s145 + $0x40] sm:$0xf] %vm758, %v694
      %776 = vst.msk [vmem:[%s145 + $0x44] sm:$0xf] %vm758, %v695
      %777 = vst.msk [vmem:[%s145 + $0x48] sm:$0xf] %vm758, %v696
      %778 = vst.msk [vmem:[%s145 + $0x4c] sm:$0xf] %vm758, %v697
      %779 = vst.msk [vmem:[%s145 + $0x50] sm:$0xf] %vm758, %v698
      %780 = vst.msk [vmem:[%s145 + $0x54] sm:$0xf] %vm758, %v699
      %781 = vst.msk [vmem:[%s145 + $0x58] sm:$0xf] %vm758, %v700
      %782 = vst.msk [vmem:[%s145 + $0x5c] sm:$0xf] %vm758, %v701
      %783 = vst.msk [vmem:[%s145 + $0x60] sm:$0xf] %vm758, %v702
      %784 = vst.msk [vmem:[%s145 + $0x64] sm:$0xf] %vm758, %v703
      %785 = vst.msk [vmem:[%s145 + $0x68] sm:$0xf] %vm758, %v704
      %786 = vst.msk [vmem:[%s145 + $0x6c] sm:$0xf] %vm758, %v705
      %787 = vst.msk [vmem:[%s145 + $0x70] sm:$0xf] %vm758, %v706
      %788 = vst.msk [vmem:[%s145 + $0x74] sm:$0xf] %vm758, %v707
      %789 = vst.msk [vmem:[%s145 + $0x78] sm:$0xf] %vm758, %v708
      %790 = vst.msk [vmem:[%s145 + $0x7c] sm:$0xf] %vm758, %v709
      %791 = vst.msk [vmem:[%s145 + $0x80] sm:$0xf] %vm758, %v710
      %792 = vst.msk [vmem:[%s145 + $0x84] sm:$0xf] %vm758, %v711
      %793 = vst.msk [vmem:[%s145 + $0x88] sm:$0xf] %vm758, %v712
      %794 = vst.msk [vmem:[%s145 + $0x8c] sm:$0xf] %vm758, %v713
      %795 = vst.msk [vmem:[%s145 + $0x90] sm:$0xf] %vm758, %v714
      %796 = vst.msk [vmem:[%s145 + $0x94] sm:$0xf] %vm758, %v715
      %797 = vst.msk [vmem:[%s145 + $0x98] sm:$0xf] %vm758, %v716
      %798 = vst.msk [vmem:[%s145 + $0x9c] sm:$0xf] %vm758, %v717
      %s799 = smul.u32 40, %s13
      %p800 = scmp.lt.s32.totalorder %s799, 79
      %s801 = scalar_select %p800, %s799, 79
      %s802 = smul.addr %s801, 4
      %s803 = scalar_lea.vmem %s2, %s802
      // Predicated region
      $region29: #{upsample_forward.1} parent=27 // pred_check
        %p804 = pneg %p78
      $region30: #{upsample_forward.1} parent=27 // pred_check_branch
        %806 = sbr.rel (%p804) target = $region32
      $region31: #{upsample_forward.1} parent=27 // pred_region
        %s807 = smul.u32 40, %s13
      $region32: #{upsample_forward.1} parent=27 // pred_fallthru
        _
    $region28: #{upsample_forward.1} parent=5 // pred_fallthru
      _
    %p808 = scmp.le.s32.totalorder 2, %s8
    // Predicated region
    $region33: #{upsample_forward.1} parent=5 // pred_check
      %p809 = pneg %p808
    $region34: #{upsample_forward.1} parent=5 // pred_check_branch
      %811 = sbr.rel (%p809) target = $region36
    $region35: #{upsample_forward.1} parent=5 // pred_region
      %s812 = ssub.s32 %s8, 2
      // Predicated region
      $region37: #{upsample_forward.1} parent=35 // pred_check
        %p813 = pneg %p84
      $region38: #{upsample_forward.1} parent=35 // pred_check_branch
        %815 = sbr.rel (%p813) target = $region40
      $region39: #{upsample_forward.1} parent=35 // pred_region
        %s816 = smul.u32 40, %s14
        %p817 = scmp.lt.s32.totalorder %s816, 79
        %s818 = scalar_select %p817, %s816, 79
        %s819 = smul.addr %s818, 4
        %s820 = scalar_lea.vmem %s2, %s819
      $region40: #{upsample_forward.1} parent=35 // pred_fallthru
        _
    $region36: #{upsample_forward.1} parent=5 // pred_fallthru
      _
  $region6: #{upsample_forward.1} parent=0 // loop_footer
    %s12 = sadd.s32 1, %s8
  $region7: #{upsample_forward.1} parent=0 // loop_footer_branch
    %7 = sbr.rel target = $region3
  $region8: #{upsample_forward.1} parent=0 // loop_exit
    _

</llo_original>
